<compile_context>
chip_gen: v7x
topology: tpu7x:2x2x1
jax: 0.10.0
libtpu: 0.0.40
codegen_flags: <defaults>
</compile_context>

<pallas_src>
import functools

import jax
import jax.numpy as jnp
from jax.experimental import pallas as pl
from jax.experimental.pallas import tpu as pltpu


def _round_up(x: int, m: int) -> int:
    return ((x + m - 1) // m) * m


# ---------------------------------------------------------------------------
# Kernels
# ---------------------------------------------------------------------------

def _linear_single_block_kernel(x_ref, w_ref, b_ref, o_ref):
    """Whole (padded) problem in one VMEM block: out = x @ w_t + b."""
    o_ref[...] = (
        jnp.dot(x_ref[...], w_ref[...], preferred_element_type=jnp.float32)
        + b_ref[...]
    ).astype(o_ref.dtype)


def _linear_tiled_kernel(x_ref, w_ref, b_ref, o_ref, acc_ref):
    """One (tm, tn) output tile, accumulated over the K grid axis (axis 2)."""
    k = pl.program_id(2)

    partial = jnp.dot(
        x_ref[...], w_ref[...], preferred_element_type=jnp.float32
    )

    @pl.when(k == 0)
    def _():
        acc_ref[...] = partial          # direct store, no zero-init round trip

    @pl.when(k != 0)
    def _():
        acc_ref[...] += partial

    # Bias add + cast + lane-dense store only once, on the last reduction step.
    @pl.when(k == pl.num_programs(2) - 1)
    def _():
        o_ref[...] = (acc_ref[...] + b_ref[...]).astype(o_ref.dtype)


# ---------------------------------------------------------------------------
# One-time parameter prep (hoisted out of the per-call forward path)
# ---------------------------------------------------------------------------

def prepare_linear_params(w, b, *, tn=256, tk=512, param_dtype=None):
    """Prepare nn.Linear params once.

    w: [O, F] (PyTorch layout), b: [O].
    Returns (w_t [Fp, Op], b_p [1, Op]) where:
      * Op = O rounded up to 128 (or to tn when O > tn) -> lane-dense output
      * Fp = F (full-K block, no zero-K padding work) when F <= tk,
             else F rounded up to tk
      * param_dtype (e.g. jnp.bfloat16) optionally narrows the weight stream;
        accumulation stays f32 in the kernel.
    tn/tk must match the values passed to linear_forward.
    """
    O, F = w.shape
    assert b.shape == (O,)
    dtype = param_dtype if param_dtype is not None else w.dtype

    Op = _round_up(O, 128) if O <= tn else _round_up(O, tn)
    Fp = F if F <= tk else _round_up(F, tk)

    w_t = jnp.asarray(w, dtype).T                      # [F, O]
    if (Fp, Op) != (F, O):
        w_t = jnp.pad(w_t, ((0, Fp - F), (0, Op - O)))
    b_p = jnp.pad(jnp.asarray(b, jnp.float32), (0, Op - O)).reshape(1, Op)
    return w_t, b_p


# ---------------------------------------------------------------------------
# Forward
# ---------------------------------------------------------------------------

@functools.partial(jax.jit, static_argnames=("out_features", "tm", "tn", "tk"))
def linear_forward(x, w_t, b_p, *, out_features, tm=256, tn=256, tk=512):
    """x: [B, F], prepared w_t: [Fp, Op], b_p: [1, Op] -> [B, out_features]."""
    B, F = x.shape
    Fp, Op = w_t.shape
    O = out_features
    assert Fp >= F and Op >= O and b_p.shape == (1, Op)

    compute_dtype = w_t.dtype
    out_dtype = x.dtype

    # bf16 packs 16 rows per sublane group, f32 packs 8.
    sub = 16 if compute_dtype == jnp.bfloat16 else 8

    x = x.astype(compute_dtype)

    tm = min(tm, _round_up(B, sub))
    tn = min(tn, Op)
    tk = min(tk, Fp)
    Bp = _round_up(B, tm)

    # Only the activation is (possibly) padded per call; weights were prepped.
    if (Bp, Fp) != (B, F):
        x = jnp.pad(x, ((0, Bp - B), (0, Fp - F)))

    single_block = (Bp <= tm) and (Op <= tn) and (Fp <= tk)

    if single_block:
        # Fast path: no grid, no K axis, no accumulator scratch.
        out_p = pl.pallas_call(
            _linear_single_block_kernel,
            out_shape=jax.ShapeDtypeStruct((Bp, Op), out_dtype),
            in_specs=[
                pl.BlockSpec(memory_space=pltpu.MemorySpace.VMEM),
                pl.BlockSpec(memory_space=pltpu.MemorySpace.VMEM),
                pl.BlockSpec(memory_space=pltpu.MemorySpace.VMEM),
            ],
            out_specs=pl.BlockSpec(memory_space=pltpu.MemorySpace.VMEM),
        )(x, w_t, b_p)
        return out_p[:B, :O]

    # Tiled path: (M, N, K) grid, f32 VMEM accumulator, K innermost.
    grid = (Bp // tm, Op // tn, Fp // tk)
    in_bytes = jnp.dtype(compute_dtype).itemsize
    cost = pl.CostEstimate(
        flops=2 * Bp * Fp * Op,
        transcendentals=0,
        bytes_accessed=(Bp * Fp + Fp * Op) * in_bytes
        + Bp * Op * jnp.dtype(out_dtype).itemsize,
    )

    out_p = pl.pallas_call(
        _linear_tiled_kernel,
        out_shape=jax.ShapeDtypeStruct((Bp, Op), out_dtype),
        grid_spec=pltpu.PrefetchScalarGridSpec(
            num_scalar_prefetch=0,
            grid=grid,
            in_specs=[
                pl.BlockSpec((tm, tk), lambda i, j, k: (i, k)),   # x tile
                pl.BlockSpec((tk, tn), lambda i, j, k: (k, j)),   # w_t tile
                pl.BlockSpec((1, tn), lambda i, j, k: (0, j)),    # bias tile
            ],
            out_specs=pl.BlockSpec((tm, tn), lambda i, j, k: (i, j)),
            scratch_shapes=[pltpu.VMEM((tm, tn), jnp.float32)],
        ),
        compiler_params=pltpu.CompilerParams(
            dimension_semantics=("parallel", "parallel", "arbitrary"),
        ),
        cost_estimate=cost,
    )(x, w_t, b_p)

    return out_p[:B, :O]


if __name__ == "__main__":
    # Shapes implied by the module: features_train.shape[1] -> input_size,
    # number of unique class targets -> output_size.
    batch = 8
    input_size = 32
    output_size = 4

    key = jax.random.PRNGKey(0)
    kx, kw, kb = jax.random.split(key, 3)

    x = jax.random.normal(kx, (batch, input_size), dtype=jnp.float32)

    # Deterministic init mimicking nn.Linear's uniform(-1/sqrt(F), 1/sqrt(F)).
    bound = 1.0 / jnp.sqrt(jnp.float32(input_size))
    w = jax.random.uniform(kw, (output_size, input_size),
                           minval=-bound, maxval=bound, dtype=jnp.float32)
    b = jax.random.uniform(kb, (output_size,),
                           minval=-bound, maxval=bound, dtype=jnp.float32)

    ref = x @ w.T + b

    # f32 path (exact): params prepared once, hoisted out of the forward call.
    w_t, b_p = prepare_linear_params(w, b)
    out = linear_forward(x, w_t, b_p, out_features=output_size)
    out = jax.block_until_ready(out)
    assert out.shape == (batch, output_size)
    assert jnp.allclose(out, ref, atol=1e-5, rtol=1e-5)

    # bf16-operand path (f32 accumulation): halves weight HBM bytes, native
    # bf16 MXU on v6e/v7x. Looser tolerance vs the f32 reference.
    w_t16, b_p16 = prepare_linear_params(w, b, param_dtype=jnp.bfloat16)
    out16 = linear_forward(x, w_t16, b_p16, out_features=output_size)
    out16 = jax.block_until_ready(out16)
    assert out16.shape == (batch, output_size)
    assert jnp.allclose(out16, ref, atol=2e-2, rtol=2e-2)

    print("KERNEL_OK")
</pallas_src>

<mosaic_0001>
module attributes {stable_mosaic.version = 11 : i64} {
  func.func @_linear_single_block_kernel(%arg0: memref<8x32xf32, #tpu.memory_space<vmem>>, %arg1: memref<32x128xf32, #tpu.memory_space<vmem>>, %arg2: memref<1x128xf32, #tpu.memory_space<vmem>>, %arg3: memref<8x128xf32, #tpu.memory_space<vmem>>) attributes {dimension_semantics = [], scalar_prefetch = 0 : i64, scratch_operands = 0 : i64, tpu.core_type = #tpu.core_type<tc>} {
    %c0 = arith.constant 0 : index
    %c0_0 = arith.constant 0 : index
    %0 = vector.load %arg0[%c0, %c0_0] : memref<8x32xf32, #tpu.memory_space<vmem>>, vector<8x32xf32>
    %c0_1 = arith.constant 0 : index
    %c0_2 = arith.constant 0 : index
    %1 = vector.load %arg1[%c0_1, %c0_2] : memref<32x128xf32, #tpu.memory_space<vmem>>, vector<32x128xf32>
    %cst = arith.constant dense<0.000000e+00> : vector<8x128xf32>
    %2 = tpu.matmul %0, %1, %cst {dimension_numbers = #tpu.dot_dimension_numbers<[1], [0], [0], [1], [0, 0, 1, 1], [], []>} : vector<8x32xf32>, vector<32x128xf32>, vector<8x128xf32> -> vector<8x128xf32>
    %c0_3 = arith.constant 0 : index
    %c0_4 = arith.constant 0 : index
    %3 = vector.load %arg2[%c0_3, %c0_4] : memref<1x128xf32, #tpu.memory_space<vmem>>, vector<1x128xf32>
    %4 = vector.broadcast %3 : vector<1x128xf32> to vector<8x128xf32>
    %5 = arith.addf %2, %4 : vector<8x128xf32>
    %c0_5 = arith.constant 0 : index
    %c0_6 = arith.constant 0 : index
    %6 = vector.load %arg3[%c0_5, %c0_6] : memref<8x128xf32, #tpu.memory_space<vmem>>, vector<8x128xf32>
    tpu.vector_store %arg3[%c0_5, %c0_6], %5 {strides = array<i32>} : memref<8x128xf32, #tpu.memory_space<vmem>>, vector<8x128xf32>,
    return
  }
}

</mosaic_0001>

<llo_original>
// kernel: linear_forward.1
$region0: #{linear_forward.1}
  #allocation0 [shape = 'u32[]', space=smem, size = 0x4, offset = 0x4, fixed_abs, tag = 'smem constant byte address 0x4 - core index']
  #allocation1 [shape = 'u32[144,128]{1,0:T(1,128)}', space=vmem, size = 0x12000, scoped, tag = 'internal scratch']
  %s0 = inlined_call_operand.hbm [shape: f32[8,32], index: 0, kind: input, shape index: {}]
  %s1 = inlined_call_operand.hbm [shape: f32[32,128], index: 1, kind: input, shape index: {}]
  %s2 = inlined_call_operand.vmem [shape: f32[1,128], index: 2, kind: input, shape index: {}]
  %s3 = inlined_call_operand.vmem [shape: f32[8,128], index: 3, kind: output, shape index: {}]
  %s4 = sld [smem:[#allocation0]]
  $region30: #{linear_forward.1} parent=0
    _
  %s6 = ssub.s32 1, %s4
  %s7 = scalar_select 0, %s6, %s4
  $region1: #{linear_forward.1} parent=0
    #allocation2 [shape = 'u8[4096]{0}', space=vmem, size = 0x1000, scoped, tag = 'input window, operand 0, single buffered']
    #allocation3 [shape = 's32[1]{0}', space=sflag, size = 0x4, scoped, tag = 'scoped memory for linear_forward.1']
    #allocation4 [shape = 'u8[16384]{0}', space=vmem, size = 0x4000, scoped, tag = 'input window, operand 1, single buffered']
    #allocation5 [shape = 's32[1]{0}', space=sflag, size = 0x4, scoped, tag = 'scoped memory for linear_forward.1']
    %8 = vsyncpa [#allocation3], 0
    %9 = vsyncpa [#allocation5], 0
    // Predicated region
    $region2: #{linear_forward.1} parent=1 // pred_check
      _
    $region3: #{linear_forward.1} parent=1 // pred_check_branch
      %11 = sbr.rel (0) target = $region5
    $region4: #{linear_forward.1} parent=1 // pred_region
      %s13 = ssub.s32 128, 128
      %14 = vsyncadd [#allocation3], %s13
      %s16 = sshll.u32 [#allocation2], 4
      %s17 = int_to_ptr.vmem [resolvable:$true] %s16
      %19 = dma.hbm_to_vmem [thread:$0]  %s0, 128, %s17, [#allocation3]
    $region5: #{linear_forward.1} parent=1 // pred_fallthru
      _
    // Predicated region
    $region6: #{linear_forward.1} parent=1 // pred_check
      _
    $region7: #{linear_forward.1} parent=1 // pred_check_branch
      %21 = sbr.rel (0) target = $region9
    $region8: #{linear_forward.1} parent=1 // pred_region
      %s23 = ssub.s32 512, 512
      %24 = vsyncadd [#allocation5], %s23
      %s25 = sshll.u32 [#allocation4], 4
      %s26 = int_to_ptr.vmem [resolvable:$true] %s25
      %31 = dma.hbm_to_vmem [thread:$0]  %s1, 512, %s26, [#allocation5], 128, 128, 8
    $region9: #{linear_forward.1} parent=1 // pred_fallthru
      _
    // Predicated region
    $region10: #{linear_forward.1} parent=1 // pred_check
      _
    $region11: #{linear_forward.1} parent=1 // pred_check_branch
      %33 = sbr.rel (0) target = $region13
    $region12: #{linear_forward.1} parent=1 // pred_region
      _
    $region13: #{linear_forward.1} parent=1 // pred_fallthru
      _
    // Predicated region
    $region14: #{linear_forward.1} parent=1 // pred_check
      _
    $region15: #{linear_forward.1} parent=1 // pred_check_branch
      %35 = sbr.rel (0) target = $region17
    $region16: #{linear_forward.1} parent=1 // pred_region
      %36 = dma.done [#allocation3], 128
    $region17: #{linear_forward.1} parent=1 // pred_fallthru
      _
    // Predicated region
    $region18: #{linear_forward.1} parent=1 // pred_check
      _
    $region19: #{linear_forward.1} parent=1 // pred_check_branch
      %38 = sbr.rel (0) target = $region21
    $region20: #{linear_forward.1} parent=1 // pred_region
      %39 = dma.done [#allocation5], 512
    $region21: #{linear_forward.1} parent=1 // pred_fallthru
      _
    %v40 = vld [vmem:[#allocation2] sm:$0xff]
    %v41 = vld [vmem:[#allocation4] sm:$0xff]
    %v42 = vld [vmem:[#allocation4 + $0x8] sm:$0xff]
    %v43 = vld [vmem:[#allocation4 + $0x10] sm:$0xff]
    %v44 = vld [vmem:[#allocation4 + $0x18] sm:$0xff]
    %v45 = vld [vmem:[%s2] sm:$0x1]
    %v47 = vlaneseq
    %v48 = vshrl.u32 %v47, 7
    %v49 = vsub.s32 0, %v48
    %v50 = vrot.slane %v45, %v49
    %vm52 = vcmask 261120
    %v54 = vsel %vm52, %v40, 0
    %56 = vmatprep.subr.mxu0 0.0
    %57 = vmatpush1.msra.mxu0 %v41
    %58 = vmatprep.subr.mxu0 0.0
    %59 = vmatpush1.msra.mxu0 %v42
    %60 = vmatprep.subr.mxu0 0.0
    %61 = vmatpush1.msra.mxu0 %v43
    %62 = vmatprep.subr.mxu0 0.0
    %63 = vmatpush1.msra.mxu0 %v44
    %64 = vmatprep.subr.mxu0 0.0
    %65 = vmatpush1.msra.mxu0 0.0
    %66 = vmatprep.subr.mxu0 0.0
    %67 = vmatpush1.msra.mxu0 0.0
    %68 = vmatprep.subr.mxu0 0.0
    %69 = vmatpush1.msra.mxu0 0.0
    %70 = vmatprep.subr.mxu0 0.0
    %71 = vmatpush1.msra.mxu0 0.0
    %72 = vmatprep.subr.mxu0 0.0
    %73 = vmatpush1.msra.mxu0 0.0
    %74 = vmatprep.subr.mxu0 0.0
    %75 = vmatpush1.msra.mxu0 0.0
    %76 = vmatprep.subr.mxu0 0.0
    %77 = vmatpush1.msra.mxu0 0.0
    %78 = vmatprep.subr.mxu0 0.0
    %79 = vmatpush1.msra.mxu0 0.0
    %80 = vmatprep.subr.mxu0 0.0
    %81 = vmatpush1.msra.mxu0 0.0
    %82 = vmatprep.subr.mxu0 0.0
    %83 = vmatpush1.msra.mxu0 0.0
    %84 = vmatprep.subr.mxu0 0.0
    %85 = vmatpush1.msra.mxu0 0.0
    %86 = vmatprep.subr.mxu0 0.0
    %87 = vmatpush1.msra.mxu0 0.0
    %88 = vmatprep.subr.mxu0 0.0
    %89 = vmatpush1.msra.mxu0 0.0
    %90 = vmatprep.subr.mxu0 0.0
    %91 = vmatpush1.msra.mxu0 0.0
    %92 = vmatprep.subr.mxu0 0.0
    %93 = vmatpush1.msra.mxu0 0.0
    %94 = vmatprep.subr.mxu0 0.0
    %95 = vmatpush1.msra.mxu0 0.0
    %96 = vmatprep.subr.mxu0 0.0
    %97 = vmatpush1.msra.mxu0 0.0
    %98 = vmatprep.subr.mxu0 0.0
    %99 = vmatpush1.msra.mxu0 0.0
    %100 = vmatprep.subr.mxu0 0.0
    %101 = vmatpush1.msra.mxu0 0.0
    %102 = vmatprep.subr.mxu0 0.0
    %103 = vmatpush1.msra.mxu0 0.0
    %104 = vmatprep.subr.mxu0 0.0
    %105 = vmatpush1.msra.mxu0 0.0
    %106 = vmatprep.subr.mxu0 0.0
    %107 = vmatpush1.msra.mxu0 0.0
    %108 = vmatprep.subr.mxu0 0.0
    %109 = vmatpush1.msra.mxu0 0.0
    %110 = vmatprep.subr.mxu0 0.0
    %111 = vmatpush1.msra.mxu0 0.0
    %112 = vmatprep.subr.mxu0 0.0
    %113 = vmatpush1.msra.mxu0 0.0
    %114 = vmatprep.subr.mxu0 0.0
    %115 = vmatpush1.msra.mxu0 0.0
    %116 = vmatprep.subr.mxu0 0.0
    %117 = vmatpush1.msra.mxu0 0.0
    %118 = vmatprep.subr.mxu0 0.0
    %119 = vmatpush1.msra.mxu0 0.0
    %120 = vmatprep.mubr.f32.mxu0 0.0
    %121 = vmatmul.mubr.f32.gmra.mrb[0].mxu0 %v54
    %v122 = vpop.f32.mrb[0].mxu0
    %v123 = vadd.f32 %v50, %v122
    %v124 = vpop.f32.mrb[0].mxu0
    %125 = vdwg.mxu0
    %126 = vst [vmem:[%s3] sm:$0xff] %v123
    // Predicated region
    $region22: #{linear_forward.1} parent=1 // pred_check
      _
    $region23: #{linear_forward.1} parent=1 // pred_check_branch
      %128 = sbr.rel (0) target = $region25
    $region24: #{linear_forward.1} parent=1 // pred_region
      _
    $region25: #{linear_forward.1} parent=1 // pred_fallthru
      _
    // Predicated region
    $region26: #{linear_forward.1} parent=1 // pred_check
      _
    $region27: #{linear_forward.1} parent=1 // pred_check_branch
      %130 = sbr.rel (0) target = $region29
    $region28: #{linear_forward.1} parent=1 // pred_region
      _
    $region29: #{linear_forward.1} parent=1 // pred_fallthru
      _
    %131 = vsyncpa [#allocation3], 1
    %132 = vsyncpa [#allocation5], 1

</llo_original>
